<compile_context>
chip_gen: v6e
topology: v6e:2x2x1
jax: 0.10.0
libtpu: 0.0.40
codegen_flags: <defaults>
</compile_context>

<pallas_src>
import functools

import jax
import jax.numpy as jnp
import numpy as np
from jax import lax
from jax.experimental import pallas as pl
from jax.experimental.pallas import tpu as pltpu


def _round_up(x, m):
    return (x + m - 1) // m * m


def _pick_tile_p(p_pad, max_lanes=2048):
    """Largest multiple-of-128 divisor of p_pad that is <= max_lanes."""
    units = p_pad // 128
    max_units = max(1, max_lanes // 128)
    for cand in range(min(units, max_units), 0, -1):
        if units % cand == 0:
            return 128 * cand
    return 128


def _make_conv3d_kernel(kd):
    """Kernel: one output (d_out, pixel-tile) block per grid step.

    refs = (x_tap_0, ..., x_tap_{kd-1}, w_ref, b_ref, o_ref)
      x_tap_k : (1, C_patch, TP) bf16   spatial im2col at depth j*sd + k*dd
      w_ref   : (kd, C_out, C_patch) bf16  (resident, constant index_map)
      b_ref   : (C_out, 1) bf16            (resident)
      o_ref   : (1, C_out, TP) bf16        lane-dense output
    """
    def kernel(*refs):
        tap_refs = refs[:kd]
        w_ref = refs[kd]
        b_ref = refs[kd + 1]
        o_ref = refs[kd + 2]
        # Unrolled depth-tap dots into a local (vreg) f32 accumulator.
        acc = jnp.dot(w_ref[0], tap_refs[0][0],
                      preferred_element_type=jnp.float32)
        for k in range(1, kd):
            acc = acc + jnp.dot(w_ref[k], tap_refs[k][0],
                                preferred_element_type=jnp.float32)
        o_ref[0] = (acc + b_ref[...].astype(jnp.float32)).astype(o_ref.dtype)

    return kernel


@functools.partial(jax.jit, static_argnames=("stride", "dilation"))
def conv3d_pallas(x, weight, bias, *, stride=(1, 1, 1), dilation=(1, 1, 1)):
    """3-D convolution, padding=0, NCDHW in / NCDHW out (PyTorch semantics)."""
    n, c_in, d, h, w = x.shape
    c_out, c_in_w, kd, kh, kw = weight.shape
    assert c_in == c_in_w
    sd, sh, sw = stride
    dd, dh, dw = dilation

    d_out = (d - (kd - 1) * dd - 1) // sd + 1
    h_out = (h - (kh - 1) * dh - 1) // sh + 1
    w_out = (w - (kw - 1) * dw - 1) // sw + 1
    p_s = h_out * w_out
    np_lanes = n * p_s                       # batch folded onto lanes
    c_patch = kh * kw * c_in

    p_pad = _round_up(np_lanes, 128)         # pad lanes to 128 only
    tile_p = _pick_tile_p(p_pad)             # divisor of p_pad -> no tile waste

    # Only the depth slices that are actually touched by some output depth.
    d_eff = (d_out - 1) * sd + (kd - 1) * dd + 1

    # (N, C, D, H, W) -> (D_eff, C, N, H, W); pixels + batch become the lanes.
    x_t = jnp.transpose(x, (2, 1, 0, 3, 4))[:d_eff]

    # Strided spatial im2col: one stride-subsampled slice per (kh, kw) tap.
    # Contraction index ordering is (tap, c_in), matching the weight flatten.
    taps = []
    for ikh in range(kh):
        for ikw in range(kw):
            sl = x_t[:, :, :,
                     ikh * dh: ikh * dh + (h_out - 1) * sh + 1: sh,
                     ikw * dw: ikw * dw + (w_out - 1) * sw + 1: sw]
            taps.append(sl.reshape(d_eff, c_in, np_lanes))
    patch = jnp.stack(taps, axis=1).reshape(d_eff, c_patch, np_lanes)
    patch = jnp.pad(patch, ((0, 0), (0, 0), (0, p_pad - np_lanes)))

    # Weight flattened per depth tap to the exact matmul operand
    # (kd, C_out, KH*KW*C_in) with (tap, c_in) contraction ordering.
    w_flat = jnp.transpose(weight, (2, 0, 3, 4, 1)).reshape(kd, c_out, c_patch)
    b2 = bias.reshape(c_out, 1)

    grid = (d_out, p_pad // tile_p)

    # One in_spec per depth tap; the same patch array is passed kd times.
    tap_specs = [
        pl.BlockSpec((1, c_patch, tile_p),
                     lambda j, p, _off=k * dd: (j * sd + _off, 0, p))
        for k in range(kd)
    ]

    out = pl.pallas_call(
        _make_conv3d_kernel(kd),
        out_shape=jax.ShapeDtypeStruct((d_out, c_out, p_pad), x.dtype),
        grid_spec=pltpu.PrefetchScalarGridSpec(
            num_scalar_prefetch=0,
            grid=grid,
            in_specs=tap_specs + [
                pl.BlockSpec((kd, c_out, c_patch), lambda j, p: (0, 0, 0)),
                pl.BlockSpec((c_out, 1), lambda j, p: (0, 0)),
            ],
            out_specs=pl.BlockSpec((1, c_out, tile_p), lambda j, p: (j, 0, p)),
        ),
        compiler_params=pltpu.CompilerParams(
            dimension_semantics=("parallel", "parallel"),
            vmem_limit_bytes=32 * 1024 * 1024),
    )(*([patch] * kd), w_flat, b2)

    # Crop lane padding; unfold (batch, pixels) and transpose back to NCDHW.
    out = out[:, :, :np_lanes].reshape(d_out, c_out, n, h_out, w_out)
    return jnp.transpose(out, (2, 1, 0, 3, 4))


class Conv3DSequenceParallel:
    """JAX/Pallas re-implementation of the PyTorch module's forward pass."""

    def __init__(self, in_channels, out_channels, kernel_size=(1, 1, 1),
                 stride=(1, 1, 1), dilation=1, bias=True,
                 dtype=jnp.bfloat16, sp_size=1, key=None):
        if key is None:
            key = jax.random.PRNGKey(0)
        if isinstance(dilation, int):
            dilation = (dilation,) * 3
        self.kernel_size = tuple(kernel_size)
        self.stride = tuple(stride)
        self.dilation = tuple(dilation)
        self.sp_size = sp_size
        self.padding = 0
        self.world_size = 1  # single device
        kd, kh, kw = self.kernel_size
        fan_in = in_channels * kd * kh * kw
        bound = 1.0 / float(np.sqrt(fan_in))
        wkey, bkey = jax.random.split(key)
        # Deterministic nn.Conv3d-style init: uniform(-1/sqrt(fan_in), +).
        self.weight = jax.random.uniform(
            wkey, (out_channels, in_channels, kd, kh, kw),
            minval=-bound, maxval=bound, dtype=jnp.float32).astype(dtype)
        if bias:
            self.bias = jax.random.uniform(
                bkey, (out_channels,), minval=-bound, maxval=bound,
                dtype=jnp.float32).astype(dtype)
        else:
            self.bias = jnp.zeros((out_channels,), dtype)

    def __call__(self, x):
        # x: (N, C_in, D, H, W), PyTorch NCDHW convention.
        depth = x.shape[2]
        _ = (depth - self.kernel_size[0]) // self.stride[0] + 1
        # TODO(synk): the sp_size>1 path uses torch.distributed depth split /
        # all-gather and async param-grad all-reduce; on a single device the
        # forward collectives are identities, so the forward reduces to the
        # plain conv3d below.
        return conv3d_pallas(x, self.weight, self.bias,
                             stride=self.stride, dilation=self.dilation)


if __name__ == "__main__":
    N, C_IN, C_OUT = 2, 4, 8
    D, H, W = 8, 16, 16
    KSIZE = (3, 3, 3)
    STRIDE = (2, 2, 2)

    key = jax.random.PRNGKey(0)
    mkey, xkey = jax.random.split(key)

    module = Conv3DSequenceParallel(
        C_IN, C_OUT, kernel_size=KSIZE, stride=STRIDE, dilation=1,
        bias=True, dtype=jnp.bfloat16, sp_size=2, key=mkey)

    x = jax.random.normal(xkey, (N, C_IN, D, H, W),
                          dtype=jnp.float32).astype(jnp.bfloat16)

    out = module(x)
    out = jax.block_until_ready(out)

    # Reference: XLA conv in f32 on the same bf16-quantized values.
    ref = lax.conv_general_dilated(
        x.astype(jnp.float32), module.weight.astype(jnp.float32),
        window_strides=STRIDE, padding="VALID",
        dimension_numbers=("NCDHW", "OIDHW", "NCDHW"))
    ref = ref + module.bias.astype(jnp.float32)[None, :, None, None, None]

    assert out.dtype == jnp.bfloat16
    assert out.shape == ref.shape, (out.shape, ref.shape)
    err = float(jnp.max(jnp.abs(out.astype(jnp.float32) - ref)))
    assert err < 5e-2, f"max abs err {err}"
    print("KERNEL_OK")
</pallas_src>

<mosaic_0001>
module attributes {stable_mosaic.version = 11 : i64} {
  func.func @kernel(%arg0: i32, %arg1: i32, %arg2: memref<1x36x128xbf16, #tpu.memory_space<vmem>>, %arg3: memref<1x36x128xbf16, #tpu.memory_space<vmem>>, %arg4: memref<1x36x128xbf16, #tpu.memory_space<vmem>>, %arg5: memref<3x8x36xbf16, #tpu.memory_space<vmem>>, %arg6: memref<8x1xbf16, #tpu.memory_space<vmem>>, %arg7: memref<1x8x128xbf16, #tpu.memory_space<vmem>>) attributes {dimension_semantics = [#tpu.dimension_semantics<parallel>, #tpu.dimension_semantics<parallel>], iteration_bounds = array<i64: 3, 1>, scalar_prefetch = 0 : i64, scratch_operands = 0 : i64, tpu.core_type = #tpu.core_type<tc>, window_params = [{transform_indices = @transform_0, window_bounds = array<i64: 1, 36, 128>}, {transform_indices = @transform_1, window_bounds = array<i64: 1, 36, 128>}, {transform_indices = @transform_2, window_bounds = array<i64: 1, 36, 128>}, {pipeline_mode = #tpu.pipeline_mode<synchronous>, transform_indices = @transform_3, window_bounds = array<i64: 3, 8, 36>}, {pipeline_mode = #tpu.pipeline_mode<synchronous>, transform_indices = @transform_4, window_bounds = array<i64: 8, 1>}, {transform_indices = @transform_5, window_bounds = array<i64: 1, 8, 128>}]} {
    %c0 = arith.constant 0 : index
    %c0_0 = arith.constant 0 : index
    %c0_1 = arith.constant 0 : index
    %0 = vector.load %arg5[%c0, %c0_0, %c0_1] : memref<3x8x36xbf16, #tpu.memory_space<vmem>>, vector<1x8x36xbf16>
    %1 = vector.shape_cast %0 : vector<1x8x36xbf16> to vector<8x36xbf16>
    %c0_2 = arith.constant 0 : index
    %c0_3 = arith.constant 0 : index
    %c0_4 = arith.constant 0 : index
    %2 = vector.load %arg2[%c0_2, %c0_3, %c0_4] : memref<1x36x128xbf16, #tpu.memory_space<vmem>>, vector<1x36x128xbf16>
    %3 = vector.shape_cast %2 : vector<1x36x128xbf16> to vector<36x128xbf16>
    %cst = arith.constant dense<0.000000e+00> : vector<8x128xf32>
    %4 = tpu.matmul %1, %3, %cst {dimension_numbers = #tpu.dot_dimension_numbers<[1], [0], [0], [1], [0, 0, 1, 1], [], []>} : vector<8x36xbf16>, vector<36x128xbf16>, vector<8x128xf32> -> vector<8x128xf32>
    %c1 = arith.constant 1 : index
    %c0_5 = arith.constant 0 : index
    %c0_6 = arith.constant 0 : index
    %5 = vector.load %arg5[%c1, %c0_5, %c0_6] : memref<3x8x36xbf16, #tpu.memory_space<vmem>>, vector<1x8x36xbf16>
    %6 = vector.shape_cast %5 : vector<1x8x36xbf16> to vector<8x36xbf16>
    %c0_7 = arith.constant 0 : index
    %c0_8 = arith.constant 0 : index
    %c0_9 = arith.constant 0 : index
    %7 = vector.load %arg3[%c0_7, %c0_8, %c0_9] : memref<1x36x128xbf16, #tpu.memory_space<vmem>>, vector<1x36x128xbf16>
    %8 = vector.shape_cast %7 : vector<1x36x128xbf16> to vector<36x128xbf16>
    %cst_10 = arith.constant dense<0.000000e+00> : vector<8x128xf32>
    %9 = tpu.matmul %6, %8, %cst_10 {dimension_numbers = #tpu.dot_dimension_numbers<[1], [0], [0], [1], [0, 0, 1, 1], [], []>} : vector<8x36xbf16>, vector<36x128xbf16>, vector<8x128xf32> -> vector<8x128xf32>
    %10 = arith.addf %4, %9 : vector<8x128xf32>
    %c2 = arith.constant 2 : index
    %c0_11 = arith.constant 0 : index
    %c0_12 = arith.constant 0 : index
    %11 = vector.load %arg5[%c2, %c0_11, %c0_12] : memref<3x8x36xbf16, #tpu.memory_space<vmem>>, vector<1x8x36xbf16>
    %12 = vector.shape_cast %11 : vector<1x8x36xbf16> to vector<8x36xbf16>
    %c0_13 = arith.constant 0 : index
    %c0_14 = arith.constant 0 : index
    %c0_15 = arith.constant 0 : index
    %13 = vector.load %arg4[%c0_13, %c0_14, %c0_15] : memref<1x36x128xbf16, #tpu.memory_space<vmem>>, vector<1x36x128xbf16>
    %14 = vector.shape_cast %13 : vector<1x36x128xbf16> to vector<36x128xbf16>
    %cst_16 = arith.constant dense<0.000000e+00> : vector<8x128xf32>
    %15 = tpu.matmul %12, %14, %cst_16 {dimension_numbers = #tpu.dot_dimension_numbers<[1], [0], [0], [1], [0, 0, 1, 1], [], []>} : vector<8x36xbf16>, vector<36x128xbf16>, vector<8x128xf32> -> vector<8x128xf32>
    %16 = arith.addf %10, %15 : vector<8x128xf32>
    %c0_17 = arith.constant 0 : index
    %c0_18 = arith.constant 0 : index
    %17 = vector.load %arg6[%c0_17, %c0_18] : memref<8x1xbf16, #tpu.memory_space<vmem>>, vector<8x1xbf16>
    %18 = arith.extf %17 : vector<8x1xbf16> to vector<8x1xf32>
    %19 = vector.broadcast %18 : vector<8x1xf32> to vector<8x128xf32>
    %20 = arith.addf %16, %19 : vector<8x128xf32>
    %21 = arith.truncf %20 : vector<8x128xf32> to vector<8x128xbf16>
    %c0_19 = arith.constant 0 : index
    %c0_20 = arith.constant 0 : index
    %c0_21 = arith.constant 0 : index
    %22 = vector.load %arg7[%c0_19, %c0_20, %c0_21] : memref<1x8x128xbf16, #tpu.memory_space<vmem>>, vector<1x8x128xbf16>
    %23 = vector.shape_cast %22 : vector<1x8x128xbf16> to vector<8x128xbf16>
    %24 = vector.shape_cast %21 : vector<8x128xbf16> to vector<1x8x128xbf16>
    tpu.vector_store %arg7[%c0_19, %c0_20, %c0_21], %24 {strides = array<i32>} : memref<1x8x128xbf16, #tpu.memory_space<vmem>>, vector<1x8x128xbf16>,
    return
  }
  func.func @transform_0(%arg0: i32, %arg1: i32) -> (i32, i32, i32) {
    %c2_i32 = arith.constant 2 : i32
    %0 = arith.muli %arg0, %c2_i32 : i32
    %c0_i32 = arith.constant 0 : i32
    %1 = arith.addi %0, %c0_i32 : i32
    %c0_i32_0 = arith.constant 0 : i32
    %c0_i32_1 = arith.constant 0 : i32
    return %1, %c0_i32_0, %arg1 : i32, i32, i32
  }
  func.func @transform_1(%arg0: i32, %arg1: i32) -> (i32, i32, i32) {
    %c2_i32 = arith.constant 2 : i32
    %0 = arith.muli %arg0, %c2_i32 : i32
    %c1_i32 = arith.constant 1 : i32
    %1 = arith.addi %0, %c1_i32 : i32
    %c0_i32 = arith.constant 0 : i32
    %c0_i32_0 = arith.constant 0 : i32
    return %1, %c0_i32, %arg1 : i32, i32, i32
  }
  func.func @transform_2(%arg0: i32, %arg1: i32) -> (i32, i32, i32) {
    %c2_i32 = arith.constant 2 : i32
    %0 = arith.muli %arg0, %c2_i32 : i32
    %c2_i32_0 = arith.constant 2 : i32
    %1 = arith.addi %0, %c2_i32_0 : i32
    %c0_i32 = arith.constant 0 : i32
    %c0_i32_1 = arith.constant 0 : i32
    return %1, %c0_i32, %arg1 : i32, i32, i32
  }
  func.func @transform_3(%arg0: i32, %arg1: i32) -> (i32, i32, i32) {
    %c0_i32 = arith.constant 0 : i32
    %c0_i32_0 = arith.constant 0 : i32
    %c0_i32_1 = arith.constant 0 : i32
    %c0_i32_2 = arith.constant 0 : i32
    return %c0_i32, %c0_i32_0, %c0_i32_1 : i32, i32, i32
  }
  func.func @transform_4(%arg0: i32, %arg1: i32) -> (i32, i32) {
    %c0_i32 = arith.constant 0 : i32
    %c0_i32_0 = arith.constant 0 : i32
    %c0_i32_1 = arith.constant 0 : i32
    return %c0_i32, %c0_i32_0 : i32, i32
  }
  func.func @transform_5(%arg0: i32, %arg1: i32) -> (i32, i32, i32) {
    %c0_i32 = arith.constant 0 : i32
    %c0_i32_0 = arith.constant 0 : i32
    return %arg0, %c0_i32, %arg1 : i32, i32, i32
  }
}

</mosaic_0001>

<llo_original>
// kernel: conv3d_pallas.1
$region0: #{conv3d_pallas.1}
  #allocation0 [shape = 'u32[]', space=smem, size = 0x4, offset = 0x4, fixed_abs, tag = 'smem constant byte address 0x4 - core index']
  #allocation1 [shape = 'u32[144,128]{1,0:T(1,128)}', space=vmem, size = 0x12000, scoped, tag = 'internal scratch']
  %s0 = inlined_call_operand.vmem [shape: bf16[7,36,128], index: 0, kind: input, shape index: {}, may-alias: {0,1,2}]
  %s1 = inlined_call_operand.vmem [shape: bf16[7,36,128], index: 1, kind: input, shape index: {}, may-alias: {0,1,2}]
  %s2 = inlined_call_operand.vmem [shape: bf16[7,36,128], index: 2, kind: input, shape index: {}, may-alias: {0,1,2}]
  %s3 = inlined_call_operand.vmem [shape: bf16[3,8,36], index: 3, kind: input, shape index: {}]
  %s4 = inlined_call_operand.vmem [shape: bf16[8,1], index: 4, kind: input, shape index: {}]
  %s5 = inlined_call_operand.vmem [shape: bf16[3,8,128], index: 5, kind: output, shape index: {}]
  %s6 = sld [smem:[#allocation0]]
  $region53: #{conv3d_pallas.1} parent=0
    _
  %s8 = ssub.s32 1, %s6
  %s9 = scalar_select 0, %s8, %s6
  loop: start=0, step=1, limit=5
  $region2: #{conv3d_pallas.1} parent=0 // loop_pre_header
    _
  $region3: #{conv3d_pallas.1} parent=0 // loop_header
    %s11 = sphi 0, %s15
    %p12 = scmp.ge.s32.totalorder %s11, 5
    %s18 = sphi 0, %s30
    %s19 = sphi 0, %s26
    %s20 = sphi 0, %s18
    %s21 = sphi 0, %s19
    %s22 = sphi 0, %s20
    %s23 = sphi 0, %s21
    %s37 = sphi 0, %s39
    %s40 = sphi 0, %s37
    %s41 = sphi 0, %s40
    %s57 = sphi 0, %s41
    %s69 = sphi 0, %s71
    %s72 = sphi 0, %s69
    %s73 = sphi 0, %s72
    %s89 = sphi 0, %s73
    %s101 = sphi 0, %s103
    %s104 = sphi 0, %s101
    %s105 = sphi 0, %s104
    %s121 = sphi 0, %s105
    %s125 = sphi 0, %s125
    %s127 = sphi 0, %s125
    %s128 = sphi 0, %s127
    %s142 = sphi 0, %s128
    %s146 = sphi 0, %s146
    %s148 = sphi 0, %s146
    %s149 = sphi 0, %s148
    %s163 = sphi 0, %s149
    %s171 = sphi 0, %s173
    %s174 = sphi 0, %s171
    %s175 = sphi 0, %s174
    %s191 = sphi 0, %s175
  $region4: #{conv3d_pallas.1} parent=0 // loop_header_branch
    %14 = sbr.rel (%p12) target = $region8
  $region5: #{conv3d_pallas.1} parent=0 // loop_body
    %s16 = ssub.s32 %s11, 1
    %s17 = ssub.s32 %s11, 2
    %s24 = sadd.s32 1, %s19
    %p25 = scmp.ge.s32.totalorder %s24, 1
    %s26 = scalar_select %p25, 0, %s24
    %s27 = sadd.s32 1, %s18
    %s28 = scalar_select %p25, %s27, %s18
    %p29 = scmp.ge.s32.totalorder %s28, 3
    %s30 = scalar_select %p29, 0, %s28
    %s31 = smul.u32 %s18, 2
    %s32 = smul.u32 %s30, 2
    %s33 = ssub.s32 %s31, %s32
    %s34 = ssub.s32 %s19, %s26
    %s35 = sor.u32 %s33, %s34
    %p36 = scmp.eq.s32.totalorder %s35, 0
    %s38 = sadd.s32 %s37, 1
    %s39 = scalar_select %p36, %s37, %s38
    %p42 = pneg %p36
    %p43 = scmp.eq.s32.totalorder %s11, 2
    %p44 = por %p42, %p43
    %p45 = scmp.ne.s32.totalorder %s37, %s40
    %p46 = scmp.eq.s32.totalorder %s11, 0
    %p47 = por %p45, %p46
    %p48 = scmp.ne.s32.totalorder %s37, %s40
    %p49 = scmp.eq.s32.totalorder %s16, 2
    %p50 = por %p48, %p49
    %p51 = scmp.ne.s32.totalorder %s40, %s41
    %p52 = scmp.eq.s32.totalorder %s16, 0
    %p53 = por %p51, %p52
    %p54 = scmp.ne.s32.totalorder %s40, %s41
    %p55 = scmp.eq.s32.totalorder %s17, 2
    %p56 = por %p54, %p55
    %p58 = scmp.ne.s32.totalorder %s41, %s57
    %p59 = scmp.eq.s32.totalorder %s17, 0
    %p60 = por %p58, %p59
    %s61 = smul.u32 %s18, 2
    %s62 = sadd.s32 %s61, 1
    %s63 = smul.u32 %s30, 2
    %s64 = sadd.s32 %s63, 1
    %s65 = ssub.s32 %s62, %s64
    %s66 = ssub.s32 %s19, %s26
    %s67 = sor.u32 %s65, %s66
    %p68 = scmp.eq.s32.totalorder %s67, 0
    %s70 = sadd.s32 %s69, 1
    %s71 = scalar_select %p68, %s69, %s70
    %p74 = pneg %p68
    %p75 = scmp.eq.s32.totalorder %s11, 2
    %p76 = por %p74, %p75
    %p77 = scmp.ne.s32.totalorder %s69, %s72
    %p78 = scmp.eq.s32.totalorder %s11, 0
    %p79 = por %p77, %p78
    %p80 = scmp.ne.s32.totalorder %s69, %s72
    %p81 = scmp.eq.s32.totalorder %s16, 2
    %p82 = por %p80, %p81
    %p83 = scmp.ne.s32.totalorder %s72, %s73
    %p84 = scmp.eq.s32.totalorder %s16, 0
    %p85 = por %p83, %p84
    %p86 = scmp.ne.s32.totalorder %s72, %s73
    %p87 = scmp.eq.s32.totalorder %s17, 2
    %p88 = por %p86, %p87
    %p90 = scmp.ne.s32.totalorder %s73, %s89
    %p91 = scmp.eq.s32.totalorder %s17, 0
    %p92 = por %p90, %p91
    %s93 = smul.u32 %s18, 2
    %s94 = sadd.s32 %s93, 2
    %s95 = smul.u32 %s30, 2
    %s96 = sadd.s32 %s95, 2
    %s97 = ssub.s32 %s94, %s96
    %s98 = ssub.s32 %s19, %s26
    %s99 = sor.u32 %s97, %s98
    %p100 = scmp.eq.s32.totalorder %s99, 0
    %s102 = sadd.s32 %s101, 1
    %s103 = scalar_select %p100, %s101, %s102
    %p106 = pneg %p100
    %p107 = scmp.eq.s32.totalorder %s11, 2
    %p108 = por %p106, %p107
    %p109 = scmp.ne.s32.totalorder %s101, %s104
    %p110 = scmp.eq.s32.totalorder %s11, 0
    %p111 = por %p109, %p110
    %p112 = scmp.ne.s32.totalorder %s101, %s104
    %p113 = scmp.eq.s32.totalorder %s16, 2
    %p114 = por %p112, %p113
    %p115 = scmp.ne.s32.totalorder %s104, %s105
    %p116 = scmp.eq.s32.totalorder %s16, 0
    %p117 = por %p115, %p116
    %p118 = scmp.ne.s32.totalorder %s104, %s105
    %p119 = scmp.eq.s32.totalorder %s17, 2
    %p120 = por %p118, %p119
    %p122 = scmp.ne.s32.totalorder %s105, %s121
    %p123 = scmp.eq.s32.totalorder %s17, 0
    %p124 = por %p122, %p123
    %s126 = sadd.s32 %s125, 1
    %p129 = scmp.eq.s32.totalorder %s11, 2
    %p130 = scmp.ne.s32.totalorder %s125, %s127
    %p131 = scmp.eq.s32.totalorder %s11, 0
    %p132 = por %p130, %p131
    %p133 = scmp.ne.s32.totalorder %s125, %s127
    %p134 = scmp.eq.s32.totalorder %s16, 2
    %p135 = por %p133, %p134
    %p136 = scmp.ne.s32.totalorder %s127, %s128
    %p137 = scmp.eq.s32.totalorder %s16, 0
    %p138 = por %p136, %p137
    %p139 = scmp.ne.s32.totalorder %s127, %s128
    %p140 = scmp.eq.s32.totalorder %s17, 2
    %p141 = por %p139, %p140
    %p143 = scmp.ne.s32.totalorder %s128, %s142
    %p144 = scmp.eq.s32.totalorder %s17, 0
    %p145 = por %p143, %p144
    %s147 = sadd.s32 %s146, 1
    %p150 = scmp.eq.s32.totalorder %s11, 2
    %p151 = scmp.ne.s32.totalorder %s146, %s148
    %p152 = scmp.eq.s32.totalorder %s11, 0
    %p153 = por %p151, %p152
    %p154 = scmp.ne.s32.totalorder %s146, %s148
    %p155 = scmp.eq.s32.totalorder %s16, 2
    %p156 = por %p154, %p155
    %p157 = scmp.ne.s32.totalorder %s148, %s149
    %p158 = scmp.eq.s32.totalorder %s16, 0
    %p159 = por %p157, %p158
    %p160 = scmp.ne.s32.totalorder %s148, %s149
    %p161 = scmp.eq.s32.totalorder %s17, 2
    %p162 = por %p160, %p161
    %p164 = scmp.ne.s32.totalorder %s149, %s163
    %p165 = scmp.eq.s32.totalorder %s17, 0
    %p166 = por %p164, %p165
    %s167 = ssub.s32 %s18, %s30
    %s168 = ssub.s32 %s19, %s26
    %s169 = sor.u32 %s167, %s168
    %p170 = scmp.eq.s32.totalorder %s169, 0
    %s172 = sadd.s32 %s171, 1
    %s173 = scalar_select %p170, %s171, %s172
    %p176 = pneg %p170
    %p177 = scmp.eq.s32.totalorder %s11, 2
    %p178 = por %p176, %p177
    %p179 = scmp.ne.s32.totalorder %s171, %s174
    %p180 = scmp.eq.s32.totalorder %s11, 0
    %p181 = por %p179, %p180
    %p182 = scmp.ne.s32.totalorder %s171, %s174
    %p183 = scmp.eq.s32.totalorder %s16, 2
    %p184 = por %p182, %p183
    %p185 = scmp.ne.s32.totalorder %s174, %s175
    %p186 = scmp.eq.s32.totalorder %s16, 0
    %p187 = por %p185, %p186
    %p188 = scmp.ne.s32.totalorder %s174, %s175
    %p189 = scmp.eq.s32.totalorder %s17, 2
    %p190 = por %p188, %p189
    %p192 = scmp.ne.s32.totalorder %s175, %s191
    %p193 = scmp.eq.s32.totalorder %s17, 0
    %p194 = por %p192, %p193
    %p195 = scmp.le.s32.totalorder 1, %s11
    %p196 = scmp.lt.s32.totalorder %s11, 4
    %p197 = pnand %p195, %p196
    %p198 = pneg %p197
    // Predicated region
    $region9: #{conv3d_pallas.1} parent=5 // pred_check
      _
    $region10: #{conv3d_pallas.1} parent=5 // pred_check_branch
      %200 = sbr.rel (%p197) target = $region12
    $region11: #{conv3d_pallas.1} parent=5 // pred_region
      %s201 = ssub.s32 %s11, 1
      // Predicated region
      $region13: #{conv3d_pallas.1} parent=11 // pred_check
        %p202 = pneg %p138
      $region14: #{conv3d_pallas.1} parent=11 // pred_check_branch
        %204 = sbr.rel (%p202) target = $region16
      $region15: #{conv3d_pallas.1} parent=11 // pred_region
        _
      $region16: #{conv3d_pallas.1} parent=11 // pred_fallthru
        _
      // Predicated region
      $region17: #{conv3d_pallas.1} parent=11 // pred_check
        %p205 = pneg %p159
      $region18: #{conv3d_pallas.1} parent=11 // pred_check_branch
        %207 = sbr.rel (%p205) target = $region20
      $region19: #{conv3d_pallas.1} parent=11 // pred_region
        _
      $region20: #{conv3d_pallas.1} parent=11 // pred_fallthru
        _
    $region12: #{conv3d_pallas.1} parent=5 // pred_fallthru
      _
    %p208 = scmp.lt.s32.totalorder %s11, 3
    // Predicated region
    $region21: #{conv3d_pallas.1} parent=5 // pred_check
      %p209 = pneg %p208
    $region22: #{conv3d_pallas.1} parent=5 // pred_check_branch
      %211 = sbr.rel (%p209) target = $region24
    $region23: #{conv3d_pallas.1} parent=5 // pred_region
      // Predicated region
      $region25: #{conv3d_pallas.1} parent=23 // pred_check
        %p212 = pneg %p47
      $region26: #{conv3d_pallas.1} parent=23 // pred_check_branch
        %214 = sbr.rel (%p212) target = $region28
      $region27: #{conv3d_pallas.1} parent=23 // pred_region
        %s215 = smul.u32 %s18, 2
        %p216 = scmp.lt.s32.totalorder %s215, 6
        %s217 = scalar_select %p216, %s215, 6
        %p218 = scmp.lt.s32.totalorder %s19, 0
        %s219 = scalar_select %p218, %s19, 0
        %s220 = smul.addr %s217, 5
        %s221 = sadd.s32 %s219, %s220
        %s222 = smul.addr %s221, 4
        %s223 = scalar_lea.vmem %s0, %s222
        %s224 = smul.u32 %s18, 2
      $region28: #{conv3d_pallas.1} parent=23 // pred_fallthru
        _
      // Predicated region
      $region29: #{conv3d_pallas.1} parent=23 // pred_check
        %p225 = pneg %p79
      $region30: #{conv3d_pallas.1} parent=23 // pred_check_branch
        %227 = sbr.rel (%p225) target = $region32
      $region31: #{conv3d_pallas.1} parent=23 // pred_region
        %s228 = smul.u32 %s18, 2
        %s229 = sadd.s32 %s228, 1
        %p230 = scmp.lt.s32.totalorder %s229, 6
        %s231 = scalar_select %p230, %s229, 6
        %p232 = scmp.lt.s32.totalorder %s19, 0
        %s233 = scalar_select %p232, %s19, 0
        %s234 = smul.addr %s231, 5
        %s235 = sadd.s32 %s233, %s234
        %s236 = smul.addr %s235, 4
        %s237 = scalar_lea.vmem %s1, %s236
        %s238 = smul.u32 %s18, 2
        %s239 = sadd.s32 %s238, 1
      $region32: #{conv3d_pallas.1} parent=23 // pred_fallthru
        _
      // Predicated region
      $region33: #{conv3d_pallas.1} parent=23 // pred_check
        %p240 = pneg %p111
      $region34: #{conv3d_pallas.1} parent=23 // pred_check_branch
        %242 = sbr.rel (%p240) target = $region36
      $region35: #{conv3d_pallas.1} parent=23 // pred_region
        %s243 = smul.u32 %s18, 2
        %s244 = sadd.s32 %s243, 2
        %p245 = scmp.lt.s32.totalorder %s244, 6
        %s246 = scalar_select %p245, %s244, 6
        %p247 = scmp.lt.s32.totalorder %s19, 0
        %s248 = scalar_select %p247, %s19, 0
        %s249 = smul.addr %s246, 5
        %s250 = sadd.s32 %s248, %s249
        %s251 = smul.addr %s250, 4
        %s252 = scalar_lea.vmem %s2, %s251
        %s253 = smul.u32 %s18, 2
        %s254 = sadd.s32 %s253, 2
      $region36: #{conv3d_pallas.1} parent=23 // pred_fallthru
        _
    $region24: #{conv3d_pallas.1} parent=5 // pred_fallthru
      _
    %p255 = scmp.le.s32.totalorder 1, %s11
    %p256 = scmp.lt.s32.totalorder %s11, 4
    %p257 = pnand %p255, %p256
    %p258 = pneg %p257
    // Predicated region
    $region37: #{conv3d_pallas.1} parent=5 // pred_check
      _
    $region38: #{conv3d_pallas.1} parent=5 // pred_check_branch
      %260 = sbr.rel (%p257) target = $region40
    $region39: #{conv3d_pallas.1} parent=5 // pred_region
      %s261 = ssub.s32 %s11, 1
      %s262 = smul.u32 %s20, 2
      %p263 = scmp.lt.s32.totalorder %s262, 6
      %s264 = scalar_select %p263, %s262, 6
      %p265 = scmp.lt.s32.totalorder %s21, 0
      %s266 = scalar_select %p265, %s21, 0
      %s267 = smul.addr %s264, 5
      %s268 = sadd.s32 %s266, %s267
      %s269 = smul.addr %s268, 4
      %s270 = scalar_lea.vmem %s0, %s269
      %p271 = pneg %p53
      %p272 = pneg %p50
      %s273 = smul.u32 %s20, 2
      %s274 = sadd.s32 %s273, 1
      %p275 = scmp.lt.s32.totalorder %s274, 6
      %s276 = scalar_select %p275, %s274, 6
      %p277 = scmp.lt.s32.totalorder %s21, 0
      %s278 = scalar_select %p277, %s21, 0
      %s279 = smul.addr %s276, 5
      %s280 = sadd.s32 %s278, %s279
      %s281 = smul.addr %s280, 4
      %s282 = scalar_lea.vmem %s1, %s281
      %p283 = pneg %p85
      %p284 = pneg %p82
      %s285 = smul.u32 %s20, 2
      %s286 = sadd.s32 %s285, 2
      %p287 = scmp.lt.s32.totalorder %s286, 6
      %s288 = scalar_select %p287, %s286, 6
      %p289 = scmp.lt.s32.totalorder %s21, 0
      %s290 = scalar_select %p289, %s21, 0
      %s291 = smul.addr %s288, 5
      %s292 = sadd.s32 %s290, %s291
      %s293 = smul.addr %s292, 4
      %s294 = scalar_lea.vmem %s2, %s293
      %p295 = pneg %p117
      %p296 = pneg %p114
      %p297 = pneg %p138
      %p298 = pneg %p135
      %p299 = pneg %p159
      %p300 = pneg %p156
      %p301 = pneg %p187
      %p302 = pneg %p184
      %p303 = scmp.lt.s32.totalorder %s20, 2
      %s304 = scalar_select %p303, %s20, 2
      %p305 = scmp.lt.s32.totalorder %s21, 0
      %s306 = scalar_select %p305, %s21, 0
      %s307 = sadd.s32 %s306, %s304
      %s308 = smul.addr %s307, 4
      %s309 = scalar_lea.vmem %s5, %s308
      %s310 = smul.u32 %s20, 2
      %p311 = scmp.lt.s32.totalorder %s310, 6
      %s312 = scalar_select %p311, %s310, 6
      %p313 = scmp.lt.s32.totalorder %s21, 0
      %s314 = scalar_select %p313, %s21, 0
      %s315 = smul.addr %s312, 5
      %s316 = sadd.s32 %s314, %s315
      %s317 = smul.addr %s316, 4
      %s318 = scalar_lea.vmem %s0, %s317
      %s319 = smul.u32 %s20, 2
      %s320 = smul.u32 %s20, 2
      %s321 = sadd.s32 %s320, 1
      %p322 = scmp.lt.s32.totalorder %s321, 6
      %s323 = scalar_select %p322, %s321, 6
      %p324 = scmp.lt.s32.totalorder %s21, 0
      %s325 = scalar_select %p324, %s21, 0
      %s326 = smul.addr %s323, 5
      %s327 = sadd.s32 %s325, %s326
      %s328 = smul.addr %s327, 4
      %s329 = scalar_lea.vmem %s1, %s328
      %s330 = smul.u32 %s20, 2
      %s331 = sadd.s32 %s330, 1
      %s332 = smul.u32 %s20, 2
      %s333 = sadd.s32 %s332, 2
      %p334 = scmp.lt.s32.totalorder %s333, 6
      %s335 = scalar_select %p334, %s333, 6
      %p336 = scmp.lt.s32.totalorder %s21, 0
      %s337 = scalar_select %p336, %s21, 0
      %s338 = smul.addr %s335, 5
      %s339 = sadd.s32 %s337, %s338
      %s340 = smul.addr %s339, 4
      %s341 = scalar_lea.vmem %s2, %s340
      %s342 = smul.u32 %s20, 2
      %s343 = sadd.s32 %s342, 2
      %p344 = scmp.lt.s32.totalorder %s20, 2
      %s345 = scalar_select %p344, %s20, 2
      %p346 = scmp.lt.s32.totalorder %s21, 0
      %s347 = scalar_select %p346, %s21, 0
      %s348 = sadd.s32 %s347, %s345
      %s349 = smul.addr %s348, 4
      %s350 = scalar_lea.vmem %s5, %s349
      %v352 = vld [vmem:[%s3] sm:$0xf]
      %v353 = vld [vmem:[%s318] sm:$0xf]
      %v354 = vld [vmem:[%s318 + $0x4] sm:$0xf]
      %v355 = vld [vmem:[%s318 + $0x8] sm:$0xf]
      %v356 = vld [vmem:[%s318 + $0xc] sm:$0xf]
      %v357 = vld [vmem:[%s318 + $0x10] sm:$0x3]
      %s358 = scalar_lea.vmem %s3, 4
      %v359 = vld [vmem:[%s358] sm:$0xf]
      %v360 = vld [vmem:[%s329] sm:$0xf]
      %v361 = vld [vmem:[%s329 + $0x4] sm:$0xf]
      %v362 = vld [vmem:[%s329 + $0x8] sm:$0xf]
      %v363 = vld [vmem:[%s329 + $0xc] sm:$0xf]
      %v364 = vld [vmem:[%s329 + $0x10] sm:$0x3]
      %v370 = vunpack.c.l.b16 %v360
      %v371 = vunpack.c.l.b16 %v361
      %v372 = vunpack.c.l.b16 %v362
      %v373 = vunpack.c.l.b16 %v363
      %v374 = vunpack.c.l.b16 %v364
      %v375 = vpack.c.b16 %v371, %v370
      %v376 = vpack.c.b16 %v373, %v372
      %v377 = vpack.c.b16 %v374, %v374
      %vm380 = vcmask 293888
      %v382 = vsel %vm380, %v359, 0
      %vm384 = vcmask 1041408
      %v386 = vsel %vm384, %v377, 0
      %388 = vmatprep.subr.bf16.mxu0 0
      %389 = vmatpush1.bf16.msra.mxu0 0
      %390 = vmatprep.subr.bf16.mxu0 0
      %391 = vmatpush1.bf16.msra.mxu0 0
      %392 = vmatprep.subr.bf16.mxu0 0
      %393 = vmatpush1.bf16.msra.mxu0 0
      %394 = vmatprep.subr.bf16.mxu0 0
      %395 = vmatpush1.bf16.msra.mxu0 0
      %396 = vmatprep.subr.bf16.mxu0 0
      %397 = vmatpush1.bf16.msra.mxu0 0
      %398 = vmatprep.subr.bf16.mxu0 0
      %399 = vmatpush1.bf16.msra.mxu0 %v386
      %400 = vmatprep.subr.bf16.mxu0 0
      %401 = vmatpush1.bf16.msra.mxu0 %v376
      %402 = vmatprep.subr.bf16.mxu0 0
      %403 = vmatpush1.bf16.msra.mxu0 %v375
      %404 = vmatprep.subr.bf16.mxu0 0
      %405 = vmatpush2.bf16.msra.mxu0 0
      %406 = vmatprep.subr.bf16.mxu0 0
      %407 = vmatpush2.bf16.msra.mxu0 0
      %408 = vmatprep.subr.bf16.mxu0 0
      %409 = vmatpush2.bf16.msra.mxu0 0
      %410 = vmatprep.subr.bf16.mxu0 0
      %411 = vmatpush2.bf16.msra.mxu0 0
      %412 = vmatprep.subr.bf16.mxu0 0
      %413 = vmatpush2.bf16.msra.mxu0 0
      %414 = vmatprep.subr.bf16.mxu0 0
      %415 = vmatpush2.bf16.msra.mxu0 0
      %416 = vmatprep.subr.bf16.mxu0 0
      %417 = vmatpush2.bf16.msra.mxu0 0
      %418 = vmatprep.subr.bf16.mxu0 0
      %419 = vmatpush2.bf16.msra.mxu0 0
      %420 = vmatprep.mubr.bf16.mxu0 0
      %421 = vmatmul.mubr.bf16.gmra.mxu0 %v382
      %v422 = vpop.f32.mrf.mxu0
      %v423 = vadd.f32 0.0, %v422
      %v424 = vpop.f32.mrf.mxu0
      %v425 = vpop.f32.mrf.mxu0
      %v426 = vpop.f32.mrf.mxu0
      %427 = vdwg.mxu0
      %v433 = vunpack.c.l.b16 %v353
      %v434 = vunpack.c.l.b16 %v354
      %v435 = vunpack.c.l.b16 %v355
      %v436 = vunpack.c.l.b16 %v356
      %v437 = vunpack.c.l.b16 %v357
      %v438 = vpack.c.b16 %v434, %v433
      %v439 = vpack.c.b16 %v436, %v435
      %v440 = vpack.c.b16 %v437, %v437
      %v444 = vsel %vm380, %v352, 0
      %v447 = vsel %vm384, %v440, 0
      %449 = vmatprep.subr.bf16.mxu0 0
      %450 = vmatpush1.bf16.msra.mxu0 0
      %451 = vmatprep.subr.bf16.mxu0 0
      %452 = vmatpush1.bf16.msra.mxu0 0
      %453 = vmatprep.subr.bf16.mxu0 0
      %454 = vmatpush1.bf16.msra.mxu0 0
      %455 = vmatprep.subr.bf16.mxu0 0
      %456 = vmatpush1.bf16.msra.mxu0 0
      %457 = vmatprep.subr.bf16.mxu0 0
      %458 = vmatpush1.bf16.msra.mxu0 0
      %459 = vmatprep.subr.bf16.mxu0 0
      %460 = vmatpush1.bf16.msra.mxu0 %v447
      %461 = vmatprep.subr.bf16.mxu0 0
      %462 = vmatpush1.bf16.msra.mxu0 %v439
      %463 = vmatprep.subr.bf16.mxu0 0
      %464 = vmatpush1.bf16.msra.mxu0 %v438
      %465 = vmatprep.subr.bf16.mxu0 0
      %466 = vmatpush2.bf16.msra.mxu0 0
      %467 = vmatprep.subr.bf16.mxu0 0
      %468 = vmatpush2.bf16.msra.mxu0 0
      %469 = vmatprep.subr.bf16.mxu0 0
      %470 = vmatpush2.bf16.msra.mxu0 0
      %471 = vmatprep.subr.bf16.mxu0 0
      %472 = vmatpush2.bf16.msra.mxu0 0
      %473 = vmatprep.subr.bf16.mxu0 0
      %474 = vmatpush2.bf16.msra.mxu0 0
      %475 = vmatprep.subr.bf16.mxu0 0
      %476 = vmatpush2.bf16.msra.mxu0 0
      %477 = vmatprep.subr.bf16.mxu0 0
      %478 = vmatpush2.bf16.msra.mxu0 0
      %479 = vmatprep.subr.bf16.mxu0 0
      %480 = vmatpush2.bf16.msra.mxu0 0
      %481 = vmatprep.mubr.bf16.mxu0 0
      %482 = vmatmul.mubr.bf16.gmra.mxu0 %v444
      %v483 = vpop.f32.mrf.mxu0
      %v484 = vadd.f32 %v423, %v483
      %v485 = vpop.f32.mrf.mxu0
      %v486 = vpop.f32.mrf.mxu0
      %v487 = vpop.f32.mrf.mxu0
      %488 = vdwg.mxu0
      %s489 = scalar_lea.vmem %s3, 8
      %v490 = vld [vmem:[%s489] sm:$0xf]
      %v491 = vld [vmem:[%s341] sm:$0xf]
      %v492 = vld [vmem:[%s341 + $0x4] sm:$0xf]
      %v493 = vld [vmem:[%s341 + $0x8] sm:$0xf]
      %v494 = vld [vmem:[%s341 + $0xc] sm:$0xf]
      %v495 = vld [vmem:[%s341 + $0x10] sm:$0x3]
      %v501 = vunpack.c.l.b16 %v491
      %v502 = vunpack.c.l.b16 %v492
      %v503 = vunpack.c.l.b16 %v493
      %v504 = vunpack.c.l.b16 %v494
      %v505 = vunpack.c.l.b16 %v495
      %v506 = vpack.c.b16 %v502, %v501
      %v507 = vpack.c.b16 %v504, %v503
      %v508 = vpack.c.b16 %v505, %v505
      %v512 = vsel %vm380, %v490, 0
      %v515 = vsel %vm384, %v508, 0
      %517 = vmatprep.subr.bf16.mxu0 0
      %518 = vmatpush1.bf16.msra.mxu0 0
      %519 = vmatprep.subr.bf16.mxu0 0
      %520 = vmatpush1.bf16.msra.mxu0 0
      %521 = vmatprep.subr.bf16.mxu0 0
      %522 = vmatpush1.bf16.msra.mxu0 0
      %523 = vmatprep.subr.bf16.mxu0 0
      %524 = vmatpush1.bf16.msra.mxu0 0
      %525 = vmatprep.subr.bf16.mxu0 0
      %526 = vmatpush1.bf16.msra.mxu0 0
      %527 = vmatprep.subr.bf16.mxu0 0
      %528 = vmatpush1.bf16.msra.mxu0 %v515
      %529 = vmatprep.subr.bf16.mxu0 0
      %530 = vmatpush1.bf16.msra.mxu0 %v507
      %531 = vmatprep.subr.bf16.mxu0 0
      %532 = vmatpush1.bf16.msra.mxu0 %v506
      %533 = vmatprep.subr.bf16.mxu0 0
      %534 = vmatpush2.bf16.msra.mxu0 0
      %535 = vmatprep.subr.bf16.mxu0 0
      %536 = vmatpush2.bf16.msra.mxu0 0
      %537 = vmatprep.subr.bf16.mxu0 0
      %538 = vmatpush2.bf16.msra.mxu0 0
      %539 = vmatprep.subr.bf16.mxu0 0
      %540 = vmatpush2.bf16.msra.mxu0 0
      %541 = vmatprep.subr.bf16.mxu0 0
      %542 = vmatpush2.bf16.msra.mxu0 0
      %543 = vmatprep.subr.bf16.mxu0 0
      %544 = vmatpush2.bf16.msra.mxu0 0
      %545 = vmatprep.subr.bf16.mxu0 0
      %546 = vmatpush2.bf16.msra.mxu0 0
      %547 = vmatprep.subr.bf16.mxu0 0
      %548 = vmatpush2.bf16.msra.mxu0 0
      %549 = vmatprep.mubr.bf16.mxu0 0
      %550 = vmatmul.mubr.bf16.gmra.mxu0 %v512
      %v551 = vpop.f32.mrf.mxu0
      %v552 = vadd.f32 0.0, %v551
      %v553 = vpop.f32.mrf.mxu0
      %v554 = vpop.f32.mrf.mxu0
      %v555 = vpop.f32.mrf.mxu0
      %556 = vdwg.mxu0
      %v557 = vadd.f32 %v484, %v552
      %v558 = vld [vmem:[%s4] sm:$0xf]
      %v559 = vunpack.c.l.bf16 %v558
      %561 = vset.pattern.permute.xlu0 0
      %562 = vperm.xlu0 %561, %v559
      %v563 = vpop.permute.xlu0 %562
      %v565 = vadd.f32 %v557, %v563
      %v566 = vpack.c.bf16 %v565, %v565
      %567 = vst [vmem:[%s350] sm:$0xf] %v566
      %p568 = scmp.lt.s32.totalorder %s20, 2
      %s569 = scalar_select %p568, %s20, 2
      %p570 = scmp.lt.s32.totalorder %s21, 0
      %s571 = scalar_select %p570, %s21, 0
      %s572 = sadd.s32 %s571, %s569
      %s573 = smul.addr %s572, 4
      %s574 = scalar_lea.vmem %s5, %s573
      // Predicated region
      $region41: #{conv3d_pallas.1} parent=39 // pred_check
        %p575 = pneg %p184
      $region42: #{conv3d_pallas.1} parent=39 // pred_check_branch
        %577 = sbr.rel (%p575) target = $region44
      $region43: #{conv3d_pallas.1} parent=39 // pred_region
        _
      $region44: #{conv3d_pallas.1} parent=39 // pred_fallthru
        _
    $region40: #{conv3d_pallas.1} parent=5 // pred_fallthru
      _
    %p578 = scmp.le.s32.totalorder 2, %s11
    // Predicated region
    $region45: #{conv3d_pallas.1} parent=5 // pred_check
      %p579 = pneg %p578
    $region46: #{conv3d_pallas.1} parent=5 // pred_check_branch
      %581 = sbr.rel (%p579) target = $region48
    $region47: #{conv3d_pallas.1} parent=5 // pred_region
      %s582 = ssub.s32 %s11, 2
      // Predicated region
      $region49: #{conv3d_pallas.1} parent=47 // pred_check
        %p583 = pneg %p190
      $region50: #{conv3d_pallas.1} parent=47 // pred_check_branch
        %585 = sbr.rel (%p583) target = $region52
      $region51: #{conv3d_pallas.1} parent=47 // pred_region
        %p586 = scmp.lt.s32.totalorder %s22, 2
        %s587 = scalar_select %p586, %s22, 2
        %p588 = scmp.lt.s32.totalorder %s23, 0
        %s589 = scalar_select %p588, %s23, 0
        %s590 = sadd.s32 %s589, %s587
        %s591 = smul.addr %s590, 4
        %s592 = scalar_lea.vmem %s5, %s591
      $region52: #{conv3d_pallas.1} parent=47 // pred_fallthru
        _
    $region48: #{conv3d_pallas.1} parent=5 // pred_fallthru
      _
  $region6: #{conv3d_pallas.1} parent=0 // loop_footer
    %s15 = sadd.s32 1, %s11
  $region7: #{conv3d_pallas.1} parent=0 // loop_footer_branch
    %10 = sbr.rel target = $region3
  $region8: #{conv3d_pallas.1} parent=0 // loop_exit
    _

</llo_original>
